<compile_context>
chip_gen: v7x
topology: tpu7x:2x2x1
jax: 0.10.0
libtpu: 0.0.40
codegen_flags: <defaults>
</compile_context>

<pallas_src>
import functools

import jax
import jax.numpy as jnp
from jax.experimental import pallas as pl
from jax.experimental.pallas import tpu as pltpu

EPS = 1e-5  # nn.BatchNorm2d default eps
F32 = jnp.float32
BF16 = jnp.bfloat16


# ---------------------------------------------------------------------------
# In-kernel helpers
# ---------------------------------------------------------------------------
def _bn_lane_dense(y, gamma_t, beta_t, gmat, count):
    """Training-mode BatchNorm2d on a lane-dense (M, L) slab, L = G*Wo*C.

    One pass computes sum and sum-of-squares (sublane reduce); the per-channel
    reduce-over-(image-group, x) + broadcast-back is a SINGLE (2,L)@(L,L)
    matmul with the precomputed 0/1 group matrix `gmat`.  gamma_t / beta_t are
    pre-tiled to (1, L).
    """
    s1 = jnp.sum(y, axis=0, keepdims=True)                       # (1, L)
    s2 = jnp.sum(y * y, axis=0, keepdims=True)                   # (1, L)
    s12 = jnp.concatenate([s1, s2], axis=0)                      # (2, L)
    st = jnp.dot(s12, gmat, preferred_element_type=F32) * (1.0 / count)
    mean, ex2 = st[0:1, :], st[1:2, :]
    var = ex2 - mean * mean                  # biased variance (training mode)
    return (y - mean) * jax.lax.rsqrt(var + EPS) * gamma_t + beta_t


def _basic_block_kernel(has_sc_conv, count, *refs):
    """Fused BasicBlock: conv1+bn1+relu -> conv2+bn2 -> (+shortcut) -> relu."""
    if has_sc_conv:
        (x1_ref, w1_ref, g1_ref, b1_ref,
         w2_ref, g2_ref, b2_ref,
         xs_ref, wsb_ref, gs_ref, bs_ref,
         gmat_ref, ntop_ref, nbot_ref, out_ref) = refs
    else:
        (x1_ref, w1_ref, g1_ref, b1_ref,
         w2_ref, g2_ref, b2_ref,
         xs_ref, gmat_ref, ntop_ref, nbot_ref, out_ref) = refs

    m = out_ref.shape[0]
    gmat = gmat_ref[...]

    # ---- conv1: single bf16 im2col matmul, then bn1 + relu ----------------
    y1 = jnp.dot(x1_ref[...], w1_ref[...], preferred_element_type=F32)
    y1 = _bn_lane_dense(y1, g1_ref[...], b1_ref[...], gmat, count)
    y1 = jnp.maximum(y1, 0.0)

    # ---- conv2: neighbour rows via XLU roll + (M,1) boundary masks, fused
    # into ONE K=3L matmul against the stacked (3L, L) weight band. ----------
    up = pltpu.roll(y1, shift=1, axis=0) * ntop_ref[...]         # row y-1
    dn = pltpu.roll(y1, shift=m - 1, axis=0) * nbot_ref[...]     # row y+1
    lhs2 = jnp.concatenate([up, y1, dn], axis=1).astype(BF16)    # (M, 3L)
    y2 = jnp.dot(lhs2, w2_ref[...], preferred_element_type=F32)
    y2 = _bn_lane_dense(y2, g2_ref[...], b2_ref[...], gmat, count)

    # ---- shortcut branch ----------------------------------------------------
    if has_sc_conv:
        sc = jnp.dot(xs_ref[...], wsb_ref[...], preferred_element_type=F32)
        sc = _bn_lane_dense(sc, gs_ref[...], bs_ref[...], gmat, count)
    else:
        sc = xs_ref[...]                     # identity, already lane-dense f32

    out_ref[...] = jnp.maximum(y2 + sc, 0.0)


# ---------------------------------------------------------------------------
# Build: hoist all parameter-derived constants out of the per-forward path
# ---------------------------------------------------------------------------
def build_basic_block(params, stride, x_shape):
    """Returns a jitted forward(x_nchw) -> out_nchw with all weight bands,
    gmat, gamma/beta tiles and boundary masks precomputed once."""
    n, cin, h, w = x_shape
    w1 = params["w1"].astype(F32)            # (3, 3, Cin, C)  HWIO
    w2 = params["w2"].astype(F32)            # (3, 3, C, C)
    c2 = w1.shape[-1]
    ho = (h + 2 - 3) // stride + 1
    wo = (w + 2 - 3) // stride + 1
    wp = w + 2

    # Lane density: fold G images into the lane axis when Wo*C < 128.
    g = 1
    if wo * c2 < 128:
        want = -(-128 // (wo * c2))          # ceil(128 / (Wo*C))
        for cand in range(min(want, n), 0, -1):
            if n % cand == 0:
                g = cand
                break
    no = n // g
    m = no * ho                              # slab rows
    lg = g * wo * c2                         # lane width (>=128 when possible)
    has_sc_conv = (stride != 1) or (cin != c2)

    eyeg = jnp.eye(g, dtype=F32)

    # conv1 weight band (stride + W-padding folded in), block-diag over G:
    #   wband1[(ky,gi,u,ci),(gj,x,co)] = [gi==gj] * w1[ky, u - x*s, ci, co]
    one1 = (jnp.arange(wp)[None, :, None]
            == jnp.arange(wo)[None, None, :] * stride
            + jnp.arange(3)[:, None, None]).astype(F32)          # (3, Wp, Wo)
    wb1 = jnp.einsum("auw,kaic->kuiwc", one1, w1)                # (3,Wp,Cin,Wo,C)
    wband1 = jnp.einsum("gh,kuiwc->kguihwc", eyeg, wb1
                        ).reshape(3 * g * wp * cin, lg).astype(BF16)

    # conv2 weight band (stride 1, same padding), stacked over ky -> (3L, L):
    #   wband2[(ky,gi,u,ci),(gj,x,co)] = [gi==gj] * w2[ky, u - x + 1, ci, co]
    one2 = ((jnp.arange(wo)[None, :, None] - jnp.arange(wo)[None, None, :] + 1)
            == jnp.arange(3)[:, None, None]).astype(F32)         # (3, Wo, Wo)
    wb2 = jnp.einsum("auw,kaic->kuiwc", one2, w2)                # (3,Wo,C,Wo,C)
    wband2 = jnp.einsum("gh,kuiwc->kguihwc", eyeg, wb2
                        ).reshape(3 * lg, lg).astype(BF16)

    # BN group-reduce matrix (per-channel sum over (gi, x), broadcast back).
    gmat = jnp.einsum("wx,cd->wcxd", jnp.ones((g * wo, g * wo), F32),
                      jnp.eye(c2, dtype=F32)).reshape(lg, lg)

    def tile(v):
        return jnp.tile(v.reshape(1, c2).astype(F32), (1, g * wo))

    g1t, b1t = tile(params["g1"]), tile(params["b1"])
    g2t, b2t = tile(params["g2"]), tile(params["b2"])

    # conv2 image-top / image-bottom boundary masks, (M, 1) f32.
    yrow = jnp.arange(m) % ho
    ntop = (yrow != 0).astype(F32).reshape(m, 1)
    nbot = (yrow != ho - 1).astype(F32).reshape(m, 1)

    if has_sc_conv:
        ws = params["ws"].astype(F32)                            # (Cin, C)
        # block-diagonal 1x1-conv weights over (gi, x)
        wsb = jnp.einsum("ab,ic->aibc", jnp.eye(g * wo, dtype=F32), ws
                         ).reshape(g * wo * cin, lg).astype(BF16)
        gst, bst = tile(params["gs"]), tile(params["bs"])

    count = float(n * ho * wo)               # elements per channel for BN
    kernel = functools.partial(_basic_block_kernel, has_sc_conv, count)
    n_in = 14 if has_sc_conv else 11
    vmem = pl.BlockSpec(memory_space=pltpu.MemorySpace.VMEM)

    call = pl.pallas_call(
        kernel,
        out_shape=jax.ShapeDtypeStruct((m, lg), F32),
        in_specs=[vmem] * n_in,
        out_specs=vmem,
    )

    @jax.jit
    def forward(x_nchw):
        x = jnp.transpose(x_nchw, (0, 2, 3, 1)).astype(F32)      # NCHW -> NHWC
        xpad = jnp.pad(x, ((0, 0), (1, 1), (1, 1), (0, 0)))
        # conv1 row-im2col over ky only (stride folded into yidx / wband1):
        #   x1[(no,y), (ky,gi,u,ci)] = xpad[no*G+gi, y*s+ky, u, ci]
        yidx = jnp.arange(ho)[:, None] * stride + jnp.arange(3)[None, :]
        xg = xpad[:, yidx].reshape(no, g, ho, 3, wp, cin)
        x1 = jnp.transpose(xg, (0, 2, 3, 1, 4, 5)
                           ).reshape(m, 3 * g * wp * cin).astype(BF16)

        if has_sc_conv:
            xs = x[:, ::stride, ::stride, :].reshape(no, g, ho, wo, cin)
            xs = jnp.transpose(xs, (0, 2, 1, 3, 4)
                               ).reshape(m, g * wo * cin).astype(BF16)
            args = (x1, wband1, g1t, b1t, wband2, g2t, b2t,
                    xs, wsb, gst, bst, gmat, ntop, nbot)
        else:
            xs = jnp.transpose(x.reshape(no, g, ho, wo, c2), (0, 2, 1, 3, 4)
                               ).reshape(m, lg)                  # identity, f32
            args = (x1, wband1, g1t, b1t, wband2, g2t, b2t,
                    xs, gmat, ntop, nbot)

        out2d = call(*args)
        out = jnp.transpose(out2d.reshape(no, ho, g, wo, c2), (0, 2, 1, 3, 4))
        return jnp.transpose(out.reshape(n, ho, wo, c2), (0, 3, 1, 2))  # NCHW

    return forward


# ---------------------------------------------------------------------------
# Pure-JAX reference (independent of the banded-matmul construction)
# ---------------------------------------------------------------------------
def _ref_forward(x_nchw, params, stride):
    def conv(x, w, s):
        return jax.lax.conv_general_dilated(
            x, w, (s, s), ((1, 1), (1, 1)),
            dimension_numbers=("NHWC", "HWIO", "NHWC"))

    def bn(y, g, b):
        mean = y.mean(axis=(0, 1, 2))
        var = ((y - mean) ** 2).mean(axis=(0, 1, 2))
        return (y - mean) * jax.lax.rsqrt(var + EPS) * g.reshape(-1) + b.reshape(-1)

    x = jnp.transpose(x_nchw, (0, 2, 3, 1)).astype(jnp.float32)
    o = jax.nn.relu(bn(conv(x, params["w1"], stride), params["g1"], params["b1"]))
    o = bn(conv(o, params["w2"], 1), params["g2"], params["b2"])
    if stride != 1 or x.shape[-1] != params["w1"].shape[-1]:
        xs = x[:, ::stride, ::stride, :]
        s = bn(jnp.einsum("nhwc,cd->nhwd", xs, params["ws"]),
               params["gs"], params["bs"])
    else:
        s = x
    o = jax.nn.relu(o + s)
    return jnp.transpose(o, (0, 3, 1, 2))


# ---------------------------------------------------------------------------
if __name__ == "__main__":
    def make_params(key, cin, planes, with_sc):
        k = jax.random.split(key, 9)
        p = {
            "w1": 0.1 * jax.random.normal(k[0], (3, 3, cin, planes), jnp.float32),
            "g1": 1.0 + 0.1 * jax.random.normal(k[1], (1, planes), jnp.float32),
            "b1": 0.1 * jax.random.normal(k[2], (1, planes), jnp.float32),
            "w2": 0.1 * jax.random.normal(k[3], (3, 3, planes, planes), jnp.float32),
            "g2": 1.0 + 0.1 * jax.random.normal(k[4], (1, planes), jnp.float32),
            "b2": 0.1 * jax.random.normal(k[5], (1, planes), jnp.float32),
        }
        if with_sc:
            p["ws"] = 0.1 * jax.random.normal(k[6], (cin, planes), jnp.float32)
            p["gs"] = 1.0 + 0.1 * jax.random.normal(k[7], (1, planes), jnp.float32)
            p["bs"] = 0.1 * jax.random.normal(k[8], (1, planes), jnp.float32)
        return p

    root = jax.random.PRNGKey(0)
    configs = [
        # (name,                 N, Cin, planes, H,  W,  stride)
        ("conv-shortcut s=1",    2, 4,   8,      16, 16, 1),
        ("identity shortcut",    2, 8,   8,      16, 16, 1),
        ("conv-shortcut s=2",    2, 4,   8,      16, 16, 2),
    ]

    for i, (name, N, CIN, PLANES, H, W, STRIDE) in enumerate(configs):
        kp, kx = jax.random.split(jax.random.fold_in(root, i))
        with_sc = (STRIDE != 1) or (CIN != PLANES)
        params = make_params(kp, CIN, PLANES, with_sc)
        x = jax.random.normal(kx, (N, CIN, H, W), jnp.float32)

        fwd = build_basic_block(params, STRIDE, x.shape)
        out = jax.block_until_ready(fwd(x))
        ref = jax.block_until_ready(_ref_forward(x, params, STRIDE))

        assert out.shape == (N, PLANES, H // STRIDE, W // STRIDE), (name, out.shape)
        err = float(jnp.max(jnp.abs(out - ref)))
        # bf16 MXU operands (f32 accumulation) -> looser tolerance than pure f32.
        assert jnp.allclose(out, ref, atol=5e-2, rtol=5e-2), f"{name}: max err {err}"
        assert float(jnp.mean(jnp.abs(out - ref))) < 2e-2, f"{name}: mean err"

    print("KERNEL_OK")
</pallas_src>

<mosaic_0001>
module attributes {stable_mosaic.version = 11 : i64} {
  func.func @_basic_block_kernel(%arg0: memref<32x216xbf16, #tpu.memory_space<vmem>>, %arg1: memref<216x128xbf16, #tpu.memory_space<vmem>>, %arg2: memref<1x128xf32, #tpu.memory_space<vmem>>, %arg3: memref<1x128xf32, #tpu.memory_space<vmem>>, %arg4: memref<384x128xbf16, #tpu.memory_space<vmem>>, %arg5: memref<1x128xf32, #tpu.memory_space<vmem>>, %arg6: memref<1x128xf32, #tpu.memory_space<vmem>>, %arg7: memref<32x64xbf16, #tpu.memory_space<vmem>>, %arg8: memref<64x128xbf16, #tpu.memory_space<vmem>>, %arg9: memref<1x128xf32, #tpu.memory_space<vmem>>, %arg10: memref<1x128xf32, #tpu.memory_space<vmem>>, %arg11: memref<128x128xf32, #tpu.memory_space<vmem>>, %arg12: memref<32x1xf32, #tpu.memory_space<vmem>>, %arg13: memref<32x1xf32, #tpu.memory_space<vmem>>, %arg14: memref<32x128xf32, #tpu.memory_space<vmem>>) attributes {dimension_semantics = [], scalar_prefetch = 0 : i64, scratch_operands = 0 : i64, tpu.core_type = #tpu.core_type<tc>} {
    %c0 = arith.constant 0 : index
    %c0_0 = arith.constant 0 : index
    %0 = vector.load %arg11[%c0, %c0_0] : memref<128x128xf32, #tpu.memory_space<vmem>>, vector<128x128xf32>
    %c0_1 = arith.constant 0 : index
    %c0_2 = arith.constant 0 : index
    %1 = vector.load %arg0[%c0_1, %c0_2] : memref<32x216xbf16, #tpu.memory_space<vmem>>, vector<32x216xbf16>
    %c0_3 = arith.constant 0 : index
    %c0_4 = arith.constant 0 : index
    %2 = vector.load %arg1[%c0_3, %c0_4] : memref<216x128xbf16, #tpu.memory_space<vmem>>, vector<216x128xbf16>
    %cst = arith.constant dense<0.000000e+00> : vector<32x128xf32>
    %3 = tpu.matmul %1, %2, %cst {dimension_numbers = #tpu.dot_dimension_numbers<[1], [0], [0], [1], [0, 0, 1, 1], [], []>} : vector<32x216xbf16>, vector<216x128xbf16>, vector<32x128xf32> -> vector<32x128xf32>
    %c0_5 = arith.constant 0 : index
    %c0_6 = arith.constant 0 : index
    %4 = vector.load %arg2[%c0_5, %c0_6] : memref<1x128xf32, #tpu.memory_space<vmem>>, vector<1x128xf32>
    %c0_7 = arith.constant 0 : index
    %c0_8 = arith.constant 0 : index
    %5 = vector.load %arg3[%c0_7, %c0_8] : memref<1x128xf32, #tpu.memory_space<vmem>>, vector<1x128xf32>
    %cst_9 = arith.constant dense<0.000000e+00> : vector<128xf32>
    %6 = vector.multi_reduction <add>, %3, %cst_9 [0] : vector<32x128xf32> to vector<128xf32>
    %7 = vector.shape_cast %6 : vector<128xf32> to vector<1x128xf32>
    %8 = arith.mulf %3, %3 : vector<32x128xf32>
    %cst_10 = arith.constant dense<0.000000e+00> : vector<128xf32>
    %9 = vector.multi_reduction <add>, %8, %cst_10 [0] : vector<32x128xf32> to vector<128xf32>
    %10 = vector.shape_cast %9 : vector<128xf32> to vector<1x128xf32>
    %11 = tpu.concatenate %7, %10 in 0 : vector<1x128xf32>, vector<1x128xf32> -> vector<2x128xf32>
    %cst_11 = arith.constant dense<0.000000e+00> : vector<2x128xf32>
    %12 = tpu.matmul %11, %0, %cst_11 {dimension_numbers = #tpu.dot_dimension_numbers<[1], [0], [0], [1], [0, 0, 1, 1], [], []>} : vector<2x128xf32>, vector<128x128xf32>, vector<2x128xf32> -> vector<2x128xf32>
    %cst_12 = arith.constant 0.001953125 : f32
    %13 = vector.broadcast %cst_12 : f32 to vector<2x128xf32>
    %14 = arith.mulf %12, %13 : vector<2x128xf32>
    %15 = vector.extract_strided_slice %14 {offsets = [0, 0], sizes = [1, 128], strides = [1, 1]} : vector<2x128xf32> to vector<1x128xf32>
    %16 = vector.extract_strided_slice %14 {offsets = [1, 0], sizes = [1, 128], strides = [1, 1]} : vector<2x128xf32> to vector<1x128xf32>
    %17 = arith.mulf %15, %15 : vector<1x128xf32>
    %18 = arith.subf %16, %17 : vector<1x128xf32>
    %19 = vector.broadcast %15 : vector<1x128xf32> to vector<32x128xf32>
    %20 = arith.subf %3, %19 : vector<32x128xf32>
    %cst_13 = arith.constant 9.99999974E-6 : f32
    %21 = vector.broadcast %cst_13 : f32 to vector<1x128xf32>
    %22 = arith.addf %18, %21 : vector<1x128xf32>
    %23 = math.rsqrt %22 : vector<1x128xf32>
    %24 = vector.broadcast %23 : vector<1x128xf32> to vector<32x128xf32>
    %25 = arith.mulf %20, %24 : vector<32x128xf32>
    %26 = vector.broadcast %4 : vector<1x128xf32> to vector<32x128xf32>
    %27 = arith.mulf %25, %26 : vector<32x128xf32>
    %28 = vector.broadcast %5 : vector<1x128xf32> to vector<32x128xf32>
    %29 = arith.addf %27, %28 : vector<32x128xf32>
    %cst_14 = arith.constant 0.000000e+00 : f32
    %30 = vector.broadcast %cst_14 : f32 to vector<32x128xf32>
    %31 = arith.maximumf %29, %30 : vector<32x128xf32>
    %c1_i32 = arith.constant 1 : i32
    %32 = tpu.dynamic_rotate %31 by %c1_i32 dim 0 : vector<32x128xf32>, i32 -> vector<32x128xf32>
    %c0_15 = arith.constant 0 : index
    %c0_16 = arith.constant 0 : index
    %33 = vector.load %arg12[%c0_15, %c0_16] : memref<32x1xf32, #tpu.memory_space<vmem>>, vector<32x1xf32>
    %34 = vector.broadcast %33 : vector<32x1xf32> to vector<32x128xf32>
    %35 = arith.mulf %32, %34 : vector<32x128xf32>
    %c31_i32 = arith.constant 31 : i32
    %36 = tpu.dynamic_rotate %31 by %c31_i32 dim 0 : vector<32x128xf32>, i32 -> vector<32x128xf32>
    %c0_17 = arith.constant 0 : index
    %c0_18 = arith.constant 0 : index
    %37 = vector.load %arg13[%c0_17, %c0_18] : memref<32x1xf32, #tpu.memory_space<vmem>>, vector<32x1xf32>
    %38 = vector.broadcast %37 : vector<32x1xf32> to vector<32x128xf32>
    %39 = arith.mulf %36, %38 : vector<32x128xf32>
    %40 = tpu.concatenate %35, %31, %39 in 1 : vector<32x128xf32>, vector<32x128xf32>, vector<32x128xf32> -> vector<32x384xf32>
    %41 = arith.truncf %40 : vector<32x384xf32> to vector<32x384xbf16>
    %c0_19 = arith.constant 0 : index
    %c0_20 = arith.constant 0 : index
    %42 = vector.load %arg4[%c0_19, %c0_20] : memref<384x128xbf16, #tpu.memory_space<vmem>>, vector<384x128xbf16>
    %cst_21 = arith.constant dense<0.000000e+00> : vector<32x128xf32>
    %43 = tpu.matmul %41, %42, %cst_21 {dimension_numbers = #tpu.dot_dimension_numbers<[1], [0], [0], [1], [0, 0, 1, 1], [], []>} : vector<32x384xbf16>, vector<384x128xbf16>, vector<32x128xf32> -> vector<32x128xf32>
    %c0_22 = arith.constant 0 : index
    %c0_23 = arith.constant 0 : index
    %44 = vector.load %arg5[%c0_22, %c0_23] : memref<1x128xf32, #tpu.memory_space<vmem>>, vector<1x128xf32>
    %c0_24 = arith.constant 0 : index
    %c0_25 = arith.constant 0 : index
    %45 = vector.load %arg6[%c0_24, %c0_25] : memref<1x128xf32, #tpu.memory_space<vmem>>, vector<1x128xf32>
    %cst_26 = arith.constant dense<0.000000e+00> : vector<128xf32>
    %46 = vector.multi_reduction <add>, %43, %cst_26 [0] : vector<32x128xf32> to vector<128xf32>
    %47 = vector.shape_cast %46 : vector<128xf32> to vector<1x128xf32>
    %48 = arith.mulf %43, %43 : vector<32x128xf32>
    %cst_27 = arith.constant dense<0.000000e+00> : vector<128xf32>
    %49 = vector.multi_reduction <add>, %48, %cst_27 [0] : vector<32x128xf32> to vector<128xf32>
    %50 = vector.shape_cast %49 : vector<128xf32> to vector<1x128xf32>
    %51 = tpu.concatenate %47, %50 in 0 : vector<1x128xf32>, vector<1x128xf32> -> vector<2x128xf32>
    %cst_28 = arith.constant dense<0.000000e+00> : vector<2x128xf32>
    %52 = tpu.matmul %51, %0, %cst_28 {dimension_numbers = #tpu.dot_dimension_numbers<[1], [0], [0], [1], [0, 0, 1, 1], [], []>} : vector<2x128xf32>, vector<128x128xf32>, vector<2x128xf32> -> vector<2x128xf32>
    %cst_29 = arith.constant 0.001953125 : f32
    %53 = vector.broadcast %cst_29 : f32 to vector<2x128xf32>
    %54 = arith.mulf %52, %53 : vector<2x128xf32>
    %55 = vector.extract_strided_slice %54 {offsets = [0, 0], sizes = [1, 128], strides = [1, 1]} : vector<2x128xf32> to vector<1x128xf32>
    %56 = vector.extract_strided_slice %54 {offsets = [1, 0], sizes = [1, 128], strides = [1, 1]} : vector<2x128xf32> to vector<1x128xf32>
    %57 = arith.mulf %55, %55 : vector<1x128xf32>
    %58 = arith.subf %56, %57 : vector<1x128xf32>
    %59 = vector.broadcast %55 : vector<1x128xf32> to vector<32x128xf32>
    %60 = arith.subf %43, %59 : vector<32x128xf32>
    %cst_30 = arith.constant 9.99999974E-6 : f32
    %61 = vector.broadcast %cst_30 : f32 to vector<1x128xf32>
    %62 = arith.addf %58, %61 : vector<1x128xf32>
    %63 = math.rsqrt %62 : vector<1x128xf32>
    %64 = vector.broadcast %63 : vector<1x128xf32> to vector<32x128xf32>
    %65 = arith.mulf %60, %64 : vector<32x128xf32>
    %66 = vector.broadcast %44 : vector<1x128xf32> to vector<32x128xf32>
    %67 = arith.mulf %65, %66 : vector<32x128xf32>
    %68 = vector.broadcast %45 : vector<1x128xf32> to vector<32x128xf32>
    %69 = arith.addf %67, %68 : vector<32x128xf32>
    %c0_31 = arith.constant 0 : index
    %c0_32 = arith.constant 0 : index
    %70 = vector.load %arg7[%c0_31, %c0_32] : memref<32x64xbf16, #tpu.memory_space<vmem>>, vector<32x64xbf16>
    %c0_33 = arith.constant 0 : index
    %c0_34 = arith.constant 0 : index
    %71 = vector.load %arg8[%c0_33, %c0_34] : memref<64x128xbf16, #tpu.memory_space<vmem>>, vector<64x128xbf16>
    %cst_35 = arith.constant dense<0.000000e+00> : vector<32x128xf32>
    %72 = tpu.matmul %70, %71, %cst_35 {dimension_numbers = #tpu.dot_dimension_numbers<[1], [0], [0], [1], [0, 0, 1, 1], [], []>} : vector<32x64xbf16>, vector<64x128xbf16>, vector<32x128xf32> -> vector<32x128xf32>
    %c0_36 = arith.constant 0 : index
    %c0_37 = arith.constant 0 : index
    %73 = vector.load %arg9[%c0_36, %c0_37] : memref<1x128xf32, #tpu.memory_space<vmem>>, vector<1x128xf32>
    %c0_38 = arith.constant 0 : index
    %c0_39 = arith.constant 0 : index
    %74 = vector.load %arg10[%c0_38, %c0_39] : memref<1x128xf32, #tpu.memory_space<vmem>>, vector<1x128xf32>
    %cst_40 = arith.constant dense<0.000000e+00> : vector<128xf32>
    %75 = vector.multi_reduction <add>, %72, %cst_40 [0] : vector<32x128xf32> to vector<128xf32>
    %76 = vector.shape_cast %75 : vector<128xf32> to vector<1x128xf32>
    %77 = arith.mulf %72, %72 : vector<32x128xf32>
    %cst_41 = arith.constant dense<0.000000e+00> : vector<128xf32>
    %78 = vector.multi_reduction <add>, %77, %cst_41 [0] : vector<32x128xf32> to vector<128xf32>
    %79 = vector.shape_cast %78 : vector<128xf32> to vector<1x128xf32>
    %80 = tpu.concatenate %76, %79 in 0 : vector<1x128xf32>, vector<1x128xf32> -> vector<2x128xf32>
    %cst_42 = arith.constant dense<0.000000e+00> : vector<2x128xf32>
    %81 = tpu.matmul %80, %0, %cst_42 {dimension_numbers = #tpu.dot_dimension_numbers<[1], [0], [0], [1], [0, 0, 1, 1], [], []>} : vector<2x128xf32>, vector<128x128xf32>, vector<2x128xf32> -> vector<2x128xf32>
    %cst_43 = arith.constant 0.001953125 : f32
    %82 = vector.broadcast %cst_43 : f32 to vector<2x128xf32>
    %83 = arith.mulf %81, %82 : vector<2x128xf32>
    %84 = vector.extract_strided_slice %83 {offsets = [0, 0], sizes = [1, 128], strides = [1, 1]} : vector<2x128xf32> to vector<1x128xf32>
    %85 = vector.extract_strided_slice %83 {offsets = [1, 0], sizes = [1, 128], strides = [1, 1]} : vector<2x128xf32> to vector<1x128xf32>
    %86 = arith.mulf %84, %84 : vector<1x128xf32>
    %87 = arith.subf %85, %86 : vector<1x128xf32>
    %88 = vector.broadcast %84 : vector<1x128xf32> to vector<32x128xf32>
    %89 = arith.subf %72, %88 : vector<32x128xf32>
    %cst_44 = arith.constant 9.99999974E-6 : f32
    %90 = vector.broadcast %cst_44 : f32 to vector<1x128xf32>
    %91 = arith.addf %87, %90 : vector<1x128xf32>
    %92 = math.rsqrt %91 : vector<1x128xf32>
    %93 = vector.broadcast %92 : vector<1x128xf32> to vector<32x128xf32>
    %94 = arith.mulf %89, %93 : vector<32x128xf32>
    %95 = vector.broadcast %73 : vector<1x128xf32> to vector<32x128xf32>
    %96 = arith.mulf %94, %95 : vector<32x128xf32>
    %97 = vector.broadcast %74 : vector<1x128xf32> to vector<32x128xf32>
    %98 = arith.addf %96, %97 : vector<32x128xf32>
    %99 = arith.addf %69, %98 : vector<32x128xf32>
    %cst_45 = arith.constant 0.000000e+00 : f32
    %100 = vector.broadcast %cst_45 : f32 to vector<32x128xf32>
    %101 = arith.maximumf %99, %100 : vector<32x128xf32>
    %c0_46 = arith.constant 0 : index
    %c0_47 = arith.constant 0 : index
    %102 = vector.load %arg14[%c0_46, %c0_47] : memref<32x128xf32, #tpu.memory_space<vmem>>, vector<32x128xf32>
    tpu.vector_store %arg14[%c0_46, %c0_47], %101 {strides = array<i32>} : memref<32x128xf32, #tpu.memory_space<vmem>>, vector<32x128xf32>,
    return
  }
}

</mosaic_0001>

<llo_original>
// kernel: forward.1
$region0: #{forward.1}
  #allocation0 [shape = 'u32[]', space=smem, size = 0x4, offset = 0x4, fixed_abs, tag = 'smem constant byte address 0x4 - core index']
  #allocation1 [shape = 'u32[144,128]{1,0:T(1,128)}', space=vmem, size = 0x12000, scoped, tag = 'internal scratch']
  %s0 = inlined_call_operand.vmem [shape: bf16[32,216], index: 0, kind: input, shape index: {}]
  %s1 = inlined_call_operand.vmem [shape: bf16[216,128], index: 1, kind: input, shape index: {}]
  %s2 = inlined_call_operand.vmem [shape: f32[1,128], index: 2, kind: input, shape index: {}]
  %s3 = inlined_call_operand.vmem [shape: f32[1,128], index: 3, kind: input, shape index: {}]
  %s4 = inlined_call_operand.vmem [shape: bf16[384,128], index: 4, kind: input, shape index: {}]
  %s5 = inlined_call_operand.vmem [shape: f32[1,128], index: 5, kind: input, shape index: {}]
  %s6 = inlined_call_operand.vmem [shape: f32[1,128], index: 6, kind: input, shape index: {}]
  %s7 = inlined_call_operand.vmem [shape: bf16[32,64], index: 7, kind: input, shape index: {}]
  %s8 = inlined_call_operand.vmem [shape: bf16[64,128], index: 8, kind: input, shape index: {}]
  %s9 = inlined_call_operand.vmem [shape: f32[1,128], index: 9, kind: input, shape index: {}]
  %s10 = inlined_call_operand.vmem [shape: f32[1,128], index: 10, kind: input, shape index: {}]
  %s11 = inlined_call_operand.vmem [shape: f32[128,128], index: 11, kind: input, shape index: {}]
  %s12 = inlined_call_operand.vmem [shape: f32[32,1], index: 12, kind: input, shape index: {}]
  %s13 = inlined_call_operand.vmem [shape: f32[32,1], index: 13, kind: input, shape index: {}]
  %s14 = inlined_call_operand.vmem [shape: f32[32,128], index: 14, kind: output, shape index: {}]
  %s15 = sld [smem:[#allocation0]]
  $region66: #{forward.1} parent=0
    _
  %s17 = ssub.s32 1, %s15
  %s18 = scalar_select 0, %s17, %s15
  // Predicated region
  $region2: #{forward.1} parent=0 // pred_check
    _
  $region3: #{forward.1} parent=0 // pred_check_branch
    %20 = sbr.rel (0) target = $region5
  $region4: #{forward.1} parent=0 // pred_region
    _
  $region5: #{forward.1} parent=0 // pred_fallthru
    _
  // Predicated region
  $region6: #{forward.1} parent=0 // pred_check
    _
  $region7: #{forward.1} parent=0 // pred_check_branch
    %22 = sbr.rel (0) target = $region9
  $region8: #{forward.1} parent=0 // pred_region
    _
  $region9: #{forward.1} parent=0 // pred_fallthru
    _
  // Predicated region
  $region10: #{forward.1} parent=0 // pred_check
    _
  $region11: #{forward.1} parent=0 // pred_check_branch
    %24 = sbr.rel (0) target = $region13
  $region12: #{forward.1} parent=0 // pred_region
    _
  $region13: #{forward.1} parent=0 // pred_fallthru
    _
  // Predicated region
  $region14: #{forward.1} parent=0 // pred_check
    _
  $region15: #{forward.1} parent=0 // pred_check_branch
    %26 = sbr.rel (0) target = $region17
  $region16: #{forward.1} parent=0 // pred_region
    _
  $region17: #{forward.1} parent=0 // pred_fallthru
    _
  // Predicated region
  $region18: #{forward.1} parent=0 // pred_check
    _
  $region19: #{forward.1} parent=0 // pred_check_branch
    %28 = sbr.rel (0) target = $region21
  $region20: #{forward.1} parent=0 // pred_region
    _
  $region21: #{forward.1} parent=0 // pred_fallthru
    _
  // Predicated region
  $region22: #{forward.1} parent=0 // pred_check
    _
  $region23: #{forward.1} parent=0 // pred_check_branch
    %30 = sbr.rel (0) target = $region25
  $region24: #{forward.1} parent=0 // pred_region
    _
  $region25: #{forward.1} parent=0 // pred_fallthru
    _
  // Predicated region
  $region26: #{forward.1} parent=0 // pred_check
    _
  $region27: #{forward.1} parent=0 // pred_check_branch
    %32 = sbr.rel (0) target = $region29
  $region28: #{forward.1} parent=0 // pred_region
    _
  $region29: #{forward.1} parent=0 // pred_fallthru
    _
  // Predicated region
  $region30: #{forward.1} parent=0 // pred_check
    _
  $region31: #{forward.1} parent=0 // pred_check_branch
    %34 = sbr.rel (0) target = $region33
  $region32: #{forward.1} parent=0 // pred_region
    _
  $region33: #{forward.1} parent=0 // pred_fallthru
    _
  // Predicated region
  $region34: #{forward.1} parent=0 // pred_check
    _
  $region35: #{forward.1} parent=0 // pred_check_branch
    %36 = sbr.rel (0) target = $region37
  $region36: #{forward.1} parent=0 // pred_region
    _
  $region37: #{forward.1} parent=0 // pred_fallthru
    _
  // Predicated region
  $region38: #{forward.1} parent=0 // pred_check
    _
  $region39: #{forward.1} parent=0 // pred_check_branch
    %38 = sbr.rel (0) target = $region41
  $region40: #{forward.1} parent=0 // pred_region
    _
  $region41: #{forward.1} parent=0 // pred_fallthru
    _
  // Predicated region
  $region42: #{forward.1} parent=0 // pred_check
    _
  $region43: #{forward.1} parent=0 // pred_check_branch
    %40 = sbr.rel (0) target = $region45
  $region44: #{forward.1} parent=0 // pred_region
    _
  $region45: #{forward.1} parent=0 // pred_fallthru
    _
  // Predicated region
  $region46: #{forward.1} parent=0 // pred_check
    _
  $region47: #{forward.1} parent=0 // pred_check_branch
    %42 = sbr.rel (0) target = $region49
  $region48: #{forward.1} parent=0 // pred_region
    _
  $region49: #{forward.1} parent=0 // pred_fallthru
    _
  // Predicated region
  $region50: #{forward.1} parent=0 // pred_check
    _
  $region51: #{forward.1} parent=0 // pred_check_branch
    %44 = sbr.rel (0) target = $region53
  $region52: #{forward.1} parent=0 // pred_region
    _
  $region53: #{forward.1} parent=0 // pred_fallthru
    _
  // Predicated region
  $region54: #{forward.1} parent=0 // pred_check
    _
  $region55: #{forward.1} parent=0 // pred_check_branch
    %46 = sbr.rel (0) target = $region57
  $region56: #{forward.1} parent=0 // pred_region
    _
  $region57: #{forward.1} parent=0 // pred_fallthru
    _
  %v48 = vld [vmem:[%s11] sm:$0xff]
  %v49 = vld [vmem:[%s11 + $0x8] sm:$0xff]
  %v50 = vld [vmem:[%s11 + $0x10] sm:$0xff]
  %v51 = vld [vmem:[%s11 + $0x18] sm:$0xff]
  %v52 = vld [vmem:[%s11 + $0x20] sm:$0xff]
  %v53 = vld [vmem:[%s11 + $0x28] sm:$0xff]
  %v54 = vld [vmem:[%s11 + $0x30] sm:$0xff]
  %v55 = vld [vmem:[%s11 + $0x38] sm:$0xff]
  %v56 = vld [vmem:[%s11 + $0x40] sm:$0xff]
  %v57 = vld [vmem:[%s11 + $0x48] sm:$0xff]
  %v58 = vld [vmem:[%s11 + $0x50] sm:$0xff]
  %v59 = vld [vmem:[%s11 + $0x58] sm:$0xff]
  %v60 = vld [vmem:[%s11 + $0x60] sm:$0xff]
  %v61 = vld [vmem:[%s11 + $0x68] sm:$0xff]
  %v62 = vld [vmem:[%s11 + $0x70] sm:$0xff]
  %v63 = vld [vmem:[%s11 + $0x78] sm:$0xff]
  %v64 = vld [vmem:[%s0] sm:$0xff]
  %v65 = vld [vmem:[%s0 + $0x8] sm:$0xff]
  %v66 = vld [vmem:[%s0 + $0x10] sm:$0xff]
  %v67 = vld [vmem:[%s0 + $0x18] sm:$0xff]
  %v68 = vld [vmem:[%s1] sm:$0xf]
  %v69 = vld [vmem:[%s1 + $0x4] sm:$0xf]
  %v70 = vld [vmem:[%s1 + $0x8] sm:$0xf]
  %v71 = vld [vmem:[%s1 + $0xc] sm:$0xf]
  %v72 = vld [vmem:[%s1 + $0x10] sm:$0xf]
  %v73 = vld [vmem:[%s1 + $0x14] sm:$0xf]
  %v74 = vld [vmem:[%s1 + $0x18] sm:$0xf]
  %v75 = vld [vmem:[%s1 + $0x1c] sm:$0xf]
  %v76 = vld [vmem:[%s1 + $0x20] sm:$0xf]
  %v77 = vld [vmem:[%s1 + $0x24] sm:$0xf]
  %v78 = vld [vmem:[%s1 + $0x28] sm:$0xf]
  %v79 = vld [vmem:[%s1 + $0x2c] sm:$0xf]
  %v80 = vld [vmem:[%s1 + $0x30] sm:$0xf]
  %v81 = vld [vmem:[%s1 + $0x34] sm:$0xf]
  %v82 = vld [vmem:[%s1 + $0x38] sm:$0xf]
  %v83 = vld [vmem:[%s1 + $0x3c] sm:$0xf]
  %v84 = vld [vmem:[%s1 + $0x40] sm:$0xf]
  %v85 = vld [vmem:[%s1 + $0x44] sm:$0xf]
  %v86 = vld [vmem:[%s1 + $0x48] sm:$0xf]
  %v87 = vld [vmem:[%s1 + $0x4c] sm:$0xf]
  %v88 = vld [vmem:[%s1 + $0x50] sm:$0xf]
  %v89 = vld [vmem:[%s1 + $0x54] sm:$0xf]
  %v90 = vld [vmem:[%s1 + $0x58] sm:$0xf]
  %v91 = vld [vmem:[%s1 + $0x5c] sm:$0xf]
  %v92 = vld [vmem:[%s1 + $0x60] sm:$0xf]
  %v93 = vld [vmem:[%s1 + $0x64] sm:$0xf]
  %v94 = vld [vmem:[%s1 + $0x68] sm:$0xf]
  %v99 = vunpack.c.l.b16 %v64
  %v100 = vunpack.c.h.b16 %v64
  %v101 = vunpack.c.l.b16 %v65
  %v102 = vunpack.c.h.b16 %v65
  %v103 = vunpack.c.l.b16 %v66
  %v104 = vunpack.c.h.b16 %v66
  %v105 = vunpack.c.l.b16 %v67
  %v106 = vunpack.c.h.b16 %v67
  %v107 = vpack.c.b16 %v101, %v99
  %v108 = vpack.c.b16 %v102, %v100
  %v109 = vpack.c.b16 %v105, %v103
  %v110 = vpack.c.b16 %v106, %v104
  %v140 = vunpack.c.l.b16 %v68
  %v141 = vunpack.c.l.b16 %v69
  %v142 = vunpack.c.l.b16 %v70
  %v143 = vunpack.c.l.b16 %v71
  %v144 = vunpack.c.l.b16 %v72
  %v145 = vunpack.c.l.b16 %v73
  %v146 = vunpack.c.l.b16 %v74
  %v147 = vunpack.c.l.b16 %v75
  %v148 = vunpack.c.l.b16 %v76
  %v149 = vunpack.c.l.b16 %v77
  %v150 = vunpack.c.l.b16 %v78
  %v151 = vunpack.c.l.b16 %v79
  %v152 = vunpack.c.l.b16 %v80
  %v153 = vunpack.c.l.b16 %v81
  %v154 = vunpack.c.l.b16 %v82
  %v155 = vunpack.c.l.b16 %v83
  %v156 = vunpack.c.l.b16 %v84
  %v157 = vunpack.c.l.b16 %v85
  %v158 = vunpack.c.l.b16 %v86
  %v159 = vunpack.c.l.b16 %v87
  %v160 = vunpack.c.l.b16 %v88
  %v161 = vunpack.c.l.b16 %v89
  %v162 = vunpack.c.l.b16 %v90
  %v163 = vunpack.c.l.b16 %v91
  %v164 = vunpack.c.l.b16 %v92
  %v165 = vunpack.c.l.b16 %v93
  %v166 = vunpack.c.l.b16 %v94
  %v167 = vpack.c.b16 %v141, %v140
  %v168 = vpack.c.b16 %v143, %v142
  %v169 = vpack.c.b16 %v145, %v144
  %v170 = vpack.c.b16 %v147, %v146
  %v171 = vpack.c.b16 %v149, %v148
  %v172 = vpack.c.b16 %v151, %v150
  %v173 = vpack.c.b16 %v153, %v152
  %v174 = vpack.c.b16 %v155, %v154
  %v175 = vpack.c.b16 %v157, %v156
  %v176 = vpack.c.b16 %v159, %v158
  %v177 = vpack.c.b16 %v161, %v160
  %v178 = vpack.c.b16 %v163, %v162
  %v179 = vpack.c.b16 %v165, %v164
  %v180 = vpack.c.b16 %v166, %v166
  %vm194 = vcmask 719872
  %v196 = vsel %vm194, %v108, 0
  %v199 = vsel %vm194, %v110, 0
  %vm201 = vcmask 1043456
  %v203 = vsel %vm201, %v180, 0
  %205 = vmatprep.subr.bf16.mxu0 0
  %206 = vmatpush1.bf16.msra.mxu0 %v167
  %207 = vmatprep.subr.bf16.mxu0 0
  %208 = vmatpush1.bf16.msra.mxu0 %v168
  %209 = vmatprep.subr.bf16.mxu0 0
  %210 = vmatpush1.bf16.msra.mxu0 %v169
  %211 = vmatprep.subr.bf16.mxu0 0
  %212 = vmatpush1.bf16.msra.mxu0 %v170
  %213 = vmatprep.subr.bf16.mxu0 0
  %214 = vmatpush1.bf16.msra.mxu0 %v171
  %215 = vmatprep.subr.bf16.mxu0 0
  %216 = vmatpush1.bf16.msra.mxu0 %v172
  %217 = vmatprep.subr.bf16.mxu0 0
  %218 = vmatpush1.bf16.msra.mxu0 %v173
  %219 = vmatprep.subr.bf16.mxu0 0
  %220 = vmatpush1.bf16.msra.mxu0 %v174
  %221 = vmatprep.subr.bf16.mxu0 0
  %222 = vmatpush1.bf16.msra.mxu0 %v175
  %223 = vmatprep.subr.bf16.mxu0 0
  %224 = vmatpush1.bf16.msra.mxu0 %v176
  %225 = vmatprep.subr.bf16.mxu0 0
  %226 = vmatpush1.bf16.msra.mxu0 %v177
  %227 = vmatprep.subr.bf16.mxu0 0
  %228 = vmatpush1.bf16.msra.mxu0 %v178
  %229 = vmatprep.subr.bf16.mxu0 0
  %230 = vmatpush1.bf16.msra.mxu0 %v179
  %231 = vmatprep.subr.bf16.mxu0 0
  %232 = vmatpush1.bf16.msra.mxu0 %v203
  %233 = vmatprep.subr.bf16.mxu0 0
  %234 = vmatpush1.bf16.msra.mxu0 0
  %235 = vmatprep.subr.bf16.mxu0 0
  %236 = vmatpush1.bf16.msra.mxu0 0
  %237 = vmatprep.mubr.bf16.mxu0 %v196
  %238 = vmatmul.mubr.bf16.gmra.mrb[0].mxu0 %v107
  %v239 = vpop.f32.mrb[0].mxu0
  %v240 = vadd.f32 0.0, %v239
  %v241 = vpop.f32.mrb[0].mxu0
  %v242 = vpop.f32.mrb[0].mxu0
  %v243 = vadd.f32 0.0, %v242
  %v244 = vpop.f32.mrb[0].mxu0
  %245 = vmatprep.mubr.bf16.mxu0 %v199
  %246 = vmatmul.mubr.bf16.gmra.mrb[0].mxu0 %v109
  %v247 = vpop.f32.mrb[0].mxu0
  %v248 = vadd.f32 0.0, %v247
  %v249 = vpop.f32.mrb[0].mxu0
  %v250 = vpop.f32.mrb[0].mxu0
  %v251 = vadd.f32 0.0, %v250
  %v252 = vpop.f32.mrb[0].mxu0
  %253 = vdwg.mxu0
  %v254 = vld [vmem:[%s2] sm:$0x1]
  %v255 = vld [vmem:[%s3] sm:$0x1]
  %v256 = vadd.f32 %v240, %v243
  %v257 = vadd.f32 %v256, %v248
  %v258 = vadd.f32 %v257, %v251
  %v259 = vrot.slane %v258, 4
  %v260 = vadd.f32 %v258, %v259
  %v261 = vrot.slane %v260, 2
  %v262 = vadd.f32 %v260, %v261
  %v263 = vrot.slane %v262, 1
  %v264 = vadd.f32 %v262, %v263
  %v265 = vmul.f32 %v240, %v240
  %v266 = vmul.f32 %v243, %v243
  %v267 = vmul.f32 %v248, %v248
  %v268 = vmul.f32 %v251, %v251
  %v269 = vadd.f32 %v265, %v266
  %v270 = vadd.f32 %v269, %v267
  %v271 = vadd.f32 %v270, %v268
  %v272 = vrot.slane %v271, 4
  %v273 = vadd.f32 %v271, %v272
  %v274 = vrot.slane %v273, 2
  %v275 = vadd.f32 %v273, %v274
  %v276 = vrot.slane %v275, 1
  %v277 = vadd.f32 %v275, %v276
  %vm278 = vcmask 1040384
  %v279 = vsel %vm278, %v264, %v277
  %280 = vmatprep.subr.mxu0 0.0
  %281 = vmatpush1.msra.mxu0 %v48
  %282 = vmatprep.subr.mxu0 0.0
  %283 = vmatpush1.msra.mxu0 %v49
  %284 = vmatprep.subr.mxu0 0.0
  %285 = vmatpush1.msra.mxu0 %v50
  %286 = vmatprep.subr.mxu0 0.0
  %287 = vmatpush1.msra.mxu0 %v51
  %288 = vmatprep.subr.mxu0 0.0
  %289 = vmatpush1.msra.mxu0 %v52
  %290 = vmatprep.subr.mxu0 0.0
  %291 = vmatpush1.msra.mxu0 %v53
  %292 = vmatprep.subr.mxu0 0.0
  %293 = vmatpush1.msra.mxu0 %v54
  %294 = vmatprep.subr.mxu0 0.0
  %295 = vmatpush1.msra.mxu0 %v55
  %296 = vmatprep.subr.mxu0 0.0
  %297 = vmatpush1.msra.mxu0 %v56
  %298 = vmatprep.subr.mxu0 0.0
  %299 = vmatpush1.msra.mxu0 %v57
  %300 = vmatprep.subr.mxu0 0.0
  %301 = vmatpush1.msra.mxu0 %v58
  %302 = vmatprep.subr.mxu0 0.0
  %303 = vmatpush1.msra.mxu0 %v59
  %304 = vmatprep.subr.mxu0 0.0
  %305 = vmatpush1.msra.mxu0 %v60
  %306 = vmatprep.subr.mxu0 0.0
  %307 = vmatpush1.msra.mxu0 %v61
  %308 = vmatprep.subr.mxu0 0.0
  %309 = vmatpush1.msra.mxu0 %v62
  %310 = vmatprep.subr.mxu0 0.0
  %311 = vmatpush1.msra.mxu0 %v63
  %312 = vmatprep.subr.mxu0 0.0
  %313 = vmatpush1.msra.mxu0 0.0
  %314 = vmatprep.subr.mxu0 0.0
  %315 = vmatpush1.msra.mxu0 0.0
  %316 = vmatprep.subr.mxu0 0.0
  %317 = vmatpush1.msra.mxu0 0.0
  %318 = vmatprep.subr.mxu0 0.0
  %319 = vmatpush1.msra.mxu0 0.0
  %320 = vmatprep.subr.mxu0 0.0
  %321 = vmatpush1.msra.mxu0 0.0
  %322 = vmatprep.subr.mxu0 0.0
  %323 = vmatpush1.msra.mxu0 0.0
  %324 = vmatprep.subr.mxu0 0.0
  %325 = vmatpush1.msra.mxu0 0.0
  %326 = vmatprep.subr.mxu0 0.0
  %327 = vmatpush1.msra.mxu0 0.0
  %328 = vmatprep.subr.mxu0 0.0
  %329 = vmatpush1.msra.mxu0 0.0
  %330 = vmatprep.subr.mxu0 0.0
  %331 = vmatpush1.msra.mxu0 0.0
  %332 = vmatprep.subr.mxu0 0.0
  %333 = vmatpush1.msra.mxu0 0.0
  %334 = vmatprep.subr.mxu0 0.0
  %335 = vmatpush1.msra.mxu0 0.0
  %336 = vmatprep.subr.mxu0 0.0
  %337 = vmatpush1.msra.mxu0 0.0
  %338 = vmatprep.subr.mxu0 0.0
  %339 = vmatpush1.msra.mxu0 0.0
  %340 = vmatprep.subr.mxu0 0.0
  %341 = vmatpush1.msra.mxu0 0.0
  %342 = vmatprep.subr.mxu0 0.0
  %343 = vmatpush1.msra.mxu0 0.0
  %344 = vmatprep.mubr.f32.mxu0 0.0
  %345 = vmatmul.mubr.f32.gmra.mrb[0].mxu0 %v279
  %v346 = vpop.f32.mrb[0].mxu0
  %v347 = vadd.f32 0.0, %v346
  %v348 = vpop.f32.mrb[0].mxu0
  %349 = vdwg.mxu0
  %v350 = vmul.f32 %v347, 0.001953125
  %v351 = vmul.f32 %v350, %v350
  %v353 = vrot.slane %v351, 7
  %v355 = vsub.f32 %v350, %v353
  %v356 = vlaneseq
  %v357 = vshrl.u32 %v356, 7
  %v358 = vsub.s32 0, %v357
  %v359 = vrot.slane %v350, %v358
  %v360 = vsub.f32 %v240, %v359
  %v361 = vsub.f32 %v243, %v359
  %v362 = vsub.f32 %v248, %v359
  %v363 = vsub.f32 %v251, %v359
  %v364 = vadd.f32 %v355, 1e-05
  %v365 = vrsqrt.pop %v364
  %v366 = vlaneseq
  %v367 = vshrl.u32 %v366, 7
  %v368 = vsub.s32 1, %v367
  %v369 = vrot.slane %v365, %v368
  %v370 = vmul.f32 %v360, %v369
  %v371 = vmul.f32 %v361, %v369
  %v372 = vmul.f32 %v362, %v369
  %v373 = vmul.f32 %v363, %v369
  %v375 = vlaneseq
  %v376 = vshrl.u32 %v375, 7
  %v377 = vsub.s32 0, %v376
  %v378 = vrot.slane %v254, %v377
  %v380 = vmul.f32 %v370, %v378
  %v381 = vmul.f32 %v371, %v378
  %v382 = vmul.f32 %v372, %v378
  %v383 = vmul.f32 %v373, %v378
  %v385 = vlaneseq
  %v386 = vshrl.u32 %v385, 7
  %v387 = vsub.s32 0, %v386
  %v388 = vrot.slane %v255, %v387
  %v390 = vadd.f32 %v380, %v388
  %v391 = vadd.f32 %v381, %v388
  %v392 = vadd.f32 %v382, %v388
  %v393 = vadd.f32 %v383, %v388
  %v394 = vmax.f32 %v390, 0.0
  %v395 = vmax.f32 %v391, 0.0
  %v396 = vmax.f32 %v392, 0.0
  %v397 = vmax.f32 %v393, 0.0
  %v398 = vrot.slane %v394, 7
  %v399 = vrot.slane %v395, 7
  %v400 = vrot.slane %v396, 7
  %v401 = vrot.slane %v397, 7
  %v402 = vlaneseq
  %v403 = vshrl.u32 %v402, 7
  %vm404 = vcmp.lt.s32.totalorder %v403, 1
  %v405 = vsel %vm404, %v400, %v401
  %v406 = vsel %vm404, %v399, %v400
  %v407 = vsel %vm404, %v398, %v399
  %v408 = vsel %vm404, %v401, %v398
  %v409 = vld [vmem:[%s12] sm:$0xff]
  %v410 = vld [vmem:[%s12 + $0x8] sm:$0xff]
  %v411 = vld [vmem:[%s12 + $0x10] sm:$0xff]
  %v412 = vld [vmem:[%s12 + $0x18] sm:$0xff]
  %414 = vset.pattern.permute.xlu0 0
  %415 = vperm.xlu0 %414, %v409
  %v416 = vpop.permute.xlu0 %415
  %419 = vset.pattern.permute.xlu0 0
  %420 = vperm.xlu0 %419, %v410
  %v421 = vpop.permute.xlu0 %420
  %424 = vset.pattern.permute.xlu0 0
  %425 = vperm.xlu0 %424, %v411
  %v426 = vpop.permute.xlu0 %425
  %429 = vset.pattern.permute.xlu0 0
  %430 = vperm.xlu0 %429, %v412
  %v431 = vpop.permute.xlu0 %430
  %v433 = vmul.f32 %v408, %v416
  %v434 = vmul.f32 %v407, %v421
  %v435 = vmul.f32 %v406, %v426
  %v436 = vmul.f32 %v405, %v431
  %v437 = vrot.slane %v394, 1
  %v438 = vrot.slane %v395, 1
  %v439 = vrot.slane %v396, 1
  %v440 = vrot.slane %v397, 1
  %vm441 = vcmp.lt.s32.totalorder %v403, 7
  %v442 = vsel %vm441, %v439, %v440
  %v443 = vsel %vm441, %v438, %v439
  %v444 = vsel %vm441, %v437, %v438
  %v445 = vsel %vm441, %v440, %v437
  %v446 = vld [vmem:[%s13] sm:$0xff]
  %v447 = vld [vmem:[%s13 + $0x8] sm:$0xff]
  %v448 = vld [vmem:[%s13 + $0x10] sm:$0xff]
  %v449 = vld [vmem:[%s13 + $0x18] sm:$0xff]
  %451 = vset.pattern.permute.xlu0 0
  %452 = vperm.xlu0 %451, %v446
  %v453 = vpop.permute.xlu0 %452
  %456 = vset.pattern.permute.xlu0 0
  %457 = vperm.xlu0 %456, %v447
  %v458 = vpop.permute.xlu0 %457
  %461 = vset.pattern.permute.xlu0 0
  %462 = vperm.xlu0 %461, %v448
  %v463 = vpop.permute.xlu0 %462
  %466 = vset.pattern.permute.xlu0 0
  %467 = vperm.xlu0 %466, %v449
  %v468 = vpop.permute.xlu0 %467
  %v470 = vmul.f32 %v444, %v453
  %v471 = vmul.f32 %v443, %v458
  %v472 = vmul.f32 %v442, %v463
  %v473 = vmul.f32 %v445, %v468
  %v474 = vpack.c.bf16 %v434, %v433
  %v475 = vpack.c.bf16 %v395, %v394
  %v476 = vpack.c.bf16 %v471, %v470
  %v477 = vpack.c.bf16 %v436, %v435
  %v478 = vpack.c.bf16 %v397, %v396
  %v479 = vpack.c.bf16 %v473, %v472
  %v480 = vld [vmem:[%s4] sm:$0xf]
  %v481 = vld [vmem:[%s4 + $0x4] sm:$0xf]
  %v482 = vld [vmem:[%s4 + $0x8] sm:$0xf]
  %v483 = vld [vmem:[%s4 + $0xc] sm:$0xf]
  %v484 = vld [vmem:[%s4 + $0x10] sm:$0xf]
  %v485 = vld [vmem:[%s4 + $0x14] sm:$0xf]
  %v486 = vld [vmem:[%s4 + $0x18] sm:$0xf]
  %v487 = vld [vmem:[%s4 + $0x1c] sm:$0xf]
  %v488 = vld [vmem:[%s4 + $0x20] sm:$0xf]
  %v489 = vld [vmem:[%s4 + $0x24] sm:$0xf]
  %v490 = vld [vmem:[%s4 + $0x28] sm:$0xf]
  %v491 = vld [vmem:[%s4 + $0x2c] sm:$0xf]
  %v492 = vld [vmem:[%s4 + $0x30] sm:$0xf]
  %v493 = vld [vmem:[%s4 + $0x34] sm:$0xf]
  %v494 = vld [vmem:[%s4 + $0x38] sm:$0xf]
  %v495 = vld [vmem:[%s4 + $0x3c] sm:$0xf]
  %v496 = vld [vmem:[%s4 + $0x40] sm:$0xf]
  %v497 = vld [vmem:[%s4 + $0x44] sm:$0xf]
  %v498 = vld [vmem:[%s4 + $0x48] sm:$0xf]
  %v499 = vld [vmem:[%s4 + $0x4c] sm:$0xf]
  %v500 = vld [vmem:[%s4 + $0x50] sm:$0xf]
  %v501 = vld [vmem:[%s4 + $0x54] sm:$0xf]
  %v502 = vld [vmem:[%s4 + $0x58] sm:$0xf]
  %v503 = vld [vmem:[%s4 + $0x5c] sm:$0xf]
  %v504 = vld [vmem:[%s4 + $0x60] sm:$0xf]
  %v505 = vld [vmem:[%s4 + $0x64] sm:$0xf]
  %v506 = vld [vmem:[%s4 + $0x68] sm:$0xf]
  %v507 = vld [vmem:[%s4 + $0x6c] sm:$0xf]
  %v508 = vld [vmem:[%s4 + $0x70] sm:$0xf]
  %v509 = vld [vmem:[%s4 + $0x74] sm:$0xf]
  %v510 = vld [vmem:[%s4 + $0x78] sm:$0xf]
  %v511 = vld [vmem:[%s4 + $0x7c] sm:$0xf]
  %v512 = vld [vmem:[%s4 + $0x80] sm:$0xf]
  %v513 = vld [vmem:[%s4 + $0x84] sm:$0xf]
  %v514 = vld [vmem:[%s4 + $0x88] sm:$0xf]
  %v515 = vld [vmem:[%s4 + $0x8c] sm:$0xf]
  %v516 = vld [vmem:[%s4 + $0x90] sm:$0xf]
  %v517 = vld [vmem:[%s4 + $0x94] sm:$0xf]
  %v518 = vld [vmem:[%s4 + $0x98] sm:$0xf]
  %v519 = vld [vmem:[%s4 + $0x9c] sm:$0xf]
  %v520 = vld [vmem:[%s4 + $0xa0] sm:$0xf]
  %v521 = vld [vmem:[%s4 + $0xa4] sm:$0xf]
  %v522 = vld [vmem:[%s4 + $0xa8] sm:$0xf]
  %v523 = vld [vmem:[%s4 + $0xac] sm:$0xf]
  %v524 = vld [vmem:[%s4 + $0xb0] sm:$0xf]
  %v525 = vld [vmem:[%s4 + $0xb4] sm:$0xf]
  %v526 = vld [vmem:[%s4 + $0xb8] sm:$0xf]
  %v527 = vld [vmem:[%s4 + $0xbc] sm:$0xf]
  %v576 = vunpack.c.l.b16 %v480
  %v577 = vunpack.c.l.b16 %v481
  %v578 = vunpack.c.l.b16 %v482
  %v579 = vunpack.c.l.b16 %v483
  %v580 = vunpack.c.l.b16 %v484
  %v581 = vunpack.c.l.b16 %v485
  %v582 = vunpack.c.l.b16 %v486
  %v583 = vunpack.c.l.b16 %v487
  %v584 = vunpack.c.l.b16 %v488
  %v585 = vunpack.c.l.b16 %v489
  %v586 = vunpack.c.l.b16 %v490
  %v587 = vunpack.c.l.b16 %v491
  %v588 = vunpack.c.l.b16 %v492
  %v589 = vunpack.c.l.b16 %v493
  %v590 = vunpack.c.l.b16 %v494
  %v591 = vunpack.c.l.b16 %v495
  %v592 = vunpack.c.l.b16 %v496
  %v593 = vunpack.c.l.b16 %v497
  %v594 = vunpack.c.l.b16 %v498
  %v595 = vunpack.c.l.b16 %v499
  %v596 = vunpack.c.l.b16 %v500
  %v597 = vunpack.c.l.b16 %v501
  %v598 = vunpack.c.l.b16 %v502
  %v599 = vunpack.c.l.b16 %v503
  %v600 = vunpack.c.l.b16 %v504
  %v601 = vunpack.c.l.b16 %v505
  %v602 = vunpack.c.l.b16 %v506
  %v603 = vunpack.c.l.b16 %v507
  %v604 = vunpack.c.l.b16 %v508
  %v605 = vunpack.c.l.b16 %v509
  %v606 = vunpack.c.l.b16 %v510
  %v607 = vunpack.c.l.b16 %v511
  %v608 = vunpack.c.l.b16 %v512
  %v609 = vunpack.c.l.b16 %v513
  %v610 = vunpack.c.l.b16 %v514
  %v611 = vunpack.c.l.b16 %v515
  %v612 = vunpack.c.l.b16 %v516
  %v613 = vunpack.c.l.b16 %v517
  %v614 = vunpack.c.l.b16 %v518
  %v615 = vunpack.c.l.b16 %v519
  %v616 = vunpack.c.l.b16 %v520
  %v617 = vunpack.c.l.b16 %v521
  %v618 = vunpack.c.l.b16 %v522
  %v619 = vunpack.c.l.b16 %v523
  %v620 = vunpack.c.l.b16 %v524
  %v621 = vunpack.c.l.b16 %v525
  %v622 = vunpack.c.l.b16 %v526
  %v623 = vunpack.c.l.b16 %v527
  %v624 = vpack.c.b16 %v577, %v576
  %v625 = vpack.c.b16 %v579, %v578
  %v626 = vpack.c.b16 %v581, %v580
  %v627 = vpack.c.b16 %v583, %v582
  %v628 = vpack.c.b16 %v585, %v584
  %v629 = vpack.c.b16 %v587, %v586
  %v630 = vpack.c.b16 %v589, %v588
  %v631 = vpack.c.b16 %v591, %v590
  %v632 = vpack.c.b16 %v593, %v592
  %v633 = vpack.c.b16 %v595, %v594
  %v634 = vpack.c.b16 %v597, %v596
  %v635 = vpack.c.b16 %v599, %v598
  %v636 = vpack.c.b16 %v601, %v600
  %v637 = vpack.c.b16 %v603, %v602
  %v638 = vpack.c.b16 %v605, %v604
  %v639 = vpack.c.b16 %v607, %v606
  %v640 = vpack.c.b16 %v609, %v608
  %v641 = vpack.c.b16 %v611, %v610
  %v642 = vpack.c.b16 %v613, %v612
  %v643 = vpack.c.b16 %v615, %v614
  %v644 = vpack.c.b16 %v617, %v616
  %v645 = vpack.c.b16 %v619, %v618
  %v646 = vpack.c.b16 %v621, %v620
  %v647 = vpack.c.b16 %v623, %v622
  %672 = vmatprep.subr.bf16.mxu0 0
  %673 = vmatpush1.bf16.msra.mxu0 %v624
  %674 = vmatprep.subr.bf16.mxu0 0
  %675 = vmatpush1.bf16.msra.mxu0 %v625
  %676 = vmatprep.subr.bf16.mxu0 0
  %677 = vmatpush1.bf16.msra.mxu0 %v626
  %678 = vmatprep.subr.bf16.mxu0 0
  %679 = vmatpush1.bf16.msra.mxu0 %v627
  %680 = vmatprep.subr.bf16.mxu0 0
  %681 = vmatpush1.bf16.msra.mxu0 %v628
  %682 = vmatprep.subr.bf16.mxu0 0
  %683 = vmatpush1.bf16.msra.mxu0 %v629
  %684 = vmatprep.subr.bf16.mxu0 0
  %685 = vmatpush1.bf16.msra.mxu0 %v630
  %686 = vmatprep.subr.bf16.mxu0 0
  %687 = vmatpush1.bf16.msra.mxu0 %v631
  %688 = vmatprep.subr.bf16.mxu0 0
  %689 = vmatpush1.bf16.msra.mxu0 %v632
  %690 = vmatprep.subr.bf16.mxu0 0
  %691 = vmatpush1.bf16.msra.mxu0 %v633
  %692 = vmatprep.subr.bf16.mxu0 0
  %693 = vmatpush1.bf16.msra.mxu0 %v634
  %694 = vmatprep.subr.bf16.mxu0 0
  %695 = vmatpush1.bf16.msra.mxu0 %v635
  %696 = vmatprep.subr.bf16.mxu0 0
  %697 = vmatpush1.bf16.msra.mxu0 %v636
  %698 = vmatprep.subr.bf16.mxu0 0
  %699 = vmatpush1.bf16.msra.mxu0 %v637
  %700 = vmatprep.subr.bf16.mxu0 0
  %701 = vmatpush1.bf16.msra.mxu0 %v638
  %702 = vmatprep.subr.bf16.mxu0 0
  %703 = vmatpush1.bf16.msra.mxu0 %v639
  %704 = vmatprep.mubr.bf16.mxu0 %v475
  %705 = vmatmul.mubr.bf16.gmra.mrb[0].mxu0 %v474
  %v706 = vpop.f32.mrb[0].mxu0
  %v707 = vadd.f32 0.0, %v706
  %v708 = vpop.f32.mrb[0].mxu0
  %v709 = vpop.f32.mrb[0].mxu0
  %v710 = vadd.f32 0.0, %v709
  %v711 = vpop.f32.mrb[0].mxu0
  %712 = vmatprep.mubr.bf16.mxu0 %v478
  %713 = vmatmul.mubr.bf16.gmra.mrb[0].mxu0 %v477
  %v714 = vpop.f32.mrb[0].mxu0
  %v715 = vadd.f32 0.0, %v714
  %v716 = vpop.f32.mrb[0].mxu0
  %v717 = vpop.f32.mrb[0].mxu0
  %v718 = vadd.f32 0.0, %v717
  %v719 = vpop.f32.mrb[0].mxu0
  %720 = vdwg.mxu0
  %721 = vmatprep.subr.bf16.mxu0 0
  %722 = vmatpush1.bf16.msra.mxu0 %v640
  %723 = vmatprep.subr.bf16.mxu0 0
  %724 = vmatpush1.bf16.msra.mxu0 %v641
  %725 = vmatprep.subr.bf16.mxu0 0
  %726 = vmatpush1.bf16.msra.mxu0 %v642
  %727 = vmatprep.subr.bf16.mxu0 0
  %728 = vmatpush1.bf16.msra.mxu0 %v643
  %729 = vmatprep.subr.bf16.mxu0 0
  %730 = vmatpush1.bf16.msra.mxu0 %v644
  %731 = vmatprep.subr.bf16.mxu0 0
  %732 = vmatpush1.bf16.msra.mxu0 %v645
  %733 = vmatprep.subr.bf16.mxu0 0
  %734 = vmatpush1.bf16.msra.mxu0 %v646
  %735 = vmatprep.subr.bf16.mxu0 0
  %736 = vmatpush1.bf16.msra.mxu0 %v647
  %737 = vmatprep.subr.bf16.mxu0 0
  %738 = vmatpush1.bf16.msra.mxu0 0
  %739 = vmatprep.subr.bf16.mxu0 0
  %740 = vmatpush1.bf16.msra.mxu0 0
  %741 = vmatprep.subr.bf16.mxu0 0
  %742 = vmatpush1.bf16.msra.mxu0 0
  %743 = vmatprep.subr.bf16.mxu0 0
  %744 = vmatpush1.bf16.msra.mxu0 0
  %745 = vmatprep.subr.bf16.mxu0 0
  %746 = vmatpush1.bf16.msra.mxu0 0
  %747 = vmatprep.subr.bf16.mxu0 0
  %748 = vmatpush1.bf16.msra.mxu0 0
  %749 = vmatprep.subr.bf16.mxu0 0
  %750 = vmatpush1.bf16.msra.mxu0 0
  %751 = vmatprep.subr.bf16.mxu0 0
  %752 = vmatpush1.bf16.msra.mxu0 0
  %753 = vmatprep.mubr.bf16.mxu0 0
  %754 = vmatmul.mubr.bf16.gmra.mrb[0].mxu0 %v476
  %v755 = vpop.f32.mrb[0].mxu0
  %v756 = vadd.f32 %v707, %v755
  %v757 = vpop.f32.mrb[0].mxu0
  %v758 = vpop.f32.mrb[0].mxu0
  %v759 = vadd.f32 %v710, %v758
  %v760 = vpop.f32.mrb[0].mxu0
  %761 = vmatprep.mubr.bf16.mxu0 0
  %762 = vmatmul.mubr.bf16.gmra.mrb[0].mxu0 %v479
  %v763 = vpop.f32.mrb[0].mxu0
  %v764 = vadd.f32 %v715, %v763
  %v765 = vpop.f32.mrb[0].mxu0
  %v766 = vpop.f32.mrb[0].mxu0
  %v767 = vadd.f32 %v718, %v766
  %v768 = vpop.f32.mrb[0].mxu0
  %769 = vdwg.mxu0
  %v770 = vld [vmem:[%s5] sm:$0x1]
  %v771 = vld [vmem:[%s6] sm:$0x1]
  %v772 = vadd.f32 %v756, %v759
  %v773 = vadd.f32 %v772, %v764
  %v774 = vadd.f32 %v773, %v767
  %v775 = vrot.slane %v774, 4
  %v776 = vadd.f32 %v774, %v775
  %v777 = vrot.slane %v776, 2
  %v778 = vadd.f32 %v776, %v777
  %v779 = vrot.slane %v778, 1
  %v780 = vadd.f32 %v778, %v779
  %v781 = vmul.f32 %v756, %v756
  %v782 = vmul.f32 %v759, %v759
  %v783 = vmul.f32 %v764, %v764
  %v784 = vmul.f32 %v767, %v767
  %v785 = vadd.f32 %v781, %v782
  %v786 = vadd.f32 %v785, %v783
  %v787 = vadd.f32 %v786, %v784
  %v788 = vrot.slane %v787, 4
  %v789 = vadd.f32 %v787, %v788
  %v790 = vrot.slane %v789, 2
  %v791 = vadd.f32 %v789, %v790
  %v792 = vrot.slane %v791, 1
  %v793 = vadd.f32 %v791, %v792
  %v794 = vsel %vm278, %v780, %v793
  %795 = vmatprep.subr.mxu0 0.0
  %796 = vmatpush1.msra.mxu0 %v48
  %797 = vmatprep.subr.mxu0 0.0
  %798 = vmatpush1.msra.mxu0 %v49
  %799 = vmatprep.subr.mxu0 0.0
  %800 = vmatpush1.msra.mxu0 %v50
  %801 = vmatprep.subr.mxu0 0.0
  %802 = vmatpush1.msra.mxu0 %v51
  %803 = vmatprep.subr.mxu0 0.0
  %804 = vmatpush1.msra.mxu0 %v52
  %805 = vmatprep.subr.mxu0 0.0
  %806 = vmatpush1.msra.mxu0 %v53
  %807 = vmatprep.subr.mxu0 0.0
  %808 = vmatpush1.msra.mxu0 %v54
  %809 = vmatprep.subr.mxu0 0.0
  %810 = vmatpush1.msra.mxu0 %v55
  %811 = vmatprep.subr.mxu0 0.0
  %812 = vmatpush1.msra.mxu0 %v56
  %813 = vmatprep.subr.mxu0 0.0
  %814 = vmatpush1.msra.mxu0 %v57
  %815 = vmatprep.subr.mxu0 0.0
  %816 = vmatpush1.msra.mxu0 %v58
  %817 = vmatprep.subr.mxu0 0.0
  %818 = vmatpush1.msra.mxu0 %v59
  %819 = vmatprep.subr.mxu0 0.0
  %820 = vmatpush1.msra.mxu0 %v60
  %821 = vmatprep.subr.mxu0 0.0
  %822 = vmatpush1.msra.mxu0 %v61
  %823 = vmatprep.subr.mxu0 0.0
  %824 = vmatpush1.msra.mxu0 %v62
  %825 = vmatprep.subr.mxu0 0.0
  %826 = vmatpush1.msra.mxu0 %v63
  %827 = vmatprep.subr.mxu0 0.0
  %828 = vmatpush1.msra.mxu0 0.0
  %829 = vmatprep.subr.mxu0 0.0
  %830 = vmatpush1.msra.mxu0 0.0
  %831 = vmatprep.subr.mxu0 0.0
  %832 = vmatpush1.msra.mxu0 0.0
  %833 = vmatprep.subr.mxu0 0.0
  %834 = vmatpush1.msra.mxu0 0.0
  %835 = vmatprep.subr.mxu0 0.0
  %836 = vmatpush1.msra.mxu0 0.0
  %837 = vmatprep.subr.mxu0 0.0
  %838 = vmatpush1.msra.mxu0 0.0
  %839 = vmatprep.subr.mxu0 0.0
  %840 = vmatpush1.msra.mxu0 0.0
  %841 = vmatprep.subr.mxu0 0.0
  %842 = vmatpush1.msra.mxu0 0.0
  %843 = vmatprep.subr.mxu0 0.0
  %844 = vmatpush1.msra.mxu0 0.0
  %845 = vmatprep.subr.mxu0 0.0
  %846 = vmatpush1.msra.mxu0 0.0
  %847 = vmatprep.subr.mxu0 0.0
  %848 = vmatpush1.msra.mxu0 0.0
  %849 = vmatprep.subr.mxu0 0.0
  %850 = vmatpush1.msra.mxu0 0.0
  %851 = vmatprep.subr.mxu0 0.0
  %852 = vmatpush1.msra.mxu0 0.0
  %853 = vmatprep.subr.mxu0 0.0
  %854 = vmatpush1.msra.mxu0 0.0
  %855 = vmatprep.subr.mxu0 0.0
  %856 = vmatpush1.msra.mxu0 0.0
  %857 = vmatprep.subr.mxu0 0.0
  %858 = vmatpush1.msra.mxu0 0.0
  %859 = vmatprep.mubr.f32.mxu0 0.0
  %860 = vmatmul.mubr.f32.gmra.mrb[0].mxu0 %v794
  %v861 = vpop.f32.mrb[0].mxu0
  %v862 = vadd.f32 0.0, %v861
  %v863 = vpop.f32.mrb[0].mxu0
  %864 = vdwg.mxu0
  %v865 = vmul.f32 %v862, 0.001953125
  %v866 = vmul.f32 %v865, %v865
  %v868 = vrot.slane %v866, 7
  %v870 = vsub.f32 %v865, %v868
  %v871 = vlaneseq
  %v872 = vshrl.u32 %v871, 7
  %v873 = vsub.s32 0, %v872
  %v874 = vrot.slane %v865, %v873
  %v875 = vsub.f32 %v756, %v874
  %v876 = vsub.f32 %v759, %v874
  %v877 = vsub.f32 %v764, %v874
  %v878 = vsub.f32 %v767, %v874
  %v879 = vadd.f32 %v870, 1e-05
  %v880 = vrsqrt.pop %v879
  %v881 = vlaneseq
  %v882 = vshrl.u32 %v881, 7
  %v883 = vsub.s32 1, %v882
  %v884 = vrot.slane %v880, %v883
  %v885 = vmul.f32 %v875, %v884
  %v886 = vmul.f32 %v876, %v884
  %v887 = vmul.f32 %v877, %v884
  %v888 = vmul.f32 %v878, %v884
  %v890 = vlaneseq
  %v891 = vshrl.u32 %v890, 7
  %v892 = vsub.s32 0, %v891
  %v893 = vrot.slane %v770, %v892
  %v895 = vmul.f32 %v885, %v893
  %v896 = vmul.f32 %v886, %v893
  %v897 = vmul.f32 %v887, %v893
  %v898 = vmul.f32 %v888, %v893
  %v900 = vlaneseq
  %v901 = vshrl.u32 %v900, 7
  %v902 = vsub.s32 0, %v901
  %v903 = vrot.slane %v771, %v902
  %v905 = vadd.f32 %v895, %v903
  %v906 = vadd.f32 %v896, %v903
  %v907 = vadd.f32 %v897, %v903
  %v908 = vadd.f32 %v898, %v903
  %v909 = vld [vmem:[%s7] sm:$0xf]
  %v910 = vld [vmem:[%s7 + $0x4] sm:$0xf]
  %v911 = vld [vmem:[%s7 + $0x8] sm:$0xf]
  %v912 = vld [vmem:[%s7 + $0xc] sm:$0xf]
  %v913 = vld [vmem:[%s8] sm:$0xf]
  %v914 = vld [vmem:[%s8 + $0x4] sm:$0xf]
  %v915 = vld [vmem:[%s8 + $0x8] sm:$0xf]
  %v916 = vld [vmem:[%s8 + $0xc] sm:$0xf]
  %v917 = vld [vmem:[%s8 + $0x10] sm:$0xf]
  %v918 = vld [vmem:[%s8 + $0x14] sm:$0xf]
  %v919 = vld [vmem:[%s8 + $0x18] sm:$0xf]
  %v920 = vld [vmem:[%s8 + $0x1c] sm:$0xf]
  %v925 = vunpack.c.l.b16 %v909
  %v926 = vunpack.c.l.b16 %v910
  %v927 = vunpack.c.l.b16 %v911
  %v928 = vunpack.c.l.b16 %v912
  %v929 = vpack.c.b16 %v926, %v925
  %v930 = vpack.c.b16 %v928, %v927
  %v939 = vunpack.c.l.b16 %v913
  %v940 = vunpack.c.l.b16 %v914
  %v941 = vunpack.c.l.b16 %v915
  %v942 = vunpack.c.l.b16 %v916
  %v943 = vunpack.c.l.b16 %v917
  %v944 = vunpack.c.l.b16 %v918
  %v945 = vunpack.c.l.b16 %v919
  %v946 = vunpack.c.l.b16 %v920
  %v947 = vpack.c.b16 %v940, %v939
  %v948 = vpack.c.b16 %v942, %v941
  %v949 = vpack.c.b16 %v944, %v943
  %v950 = vpack.c.b16 %v946, %v945
  %vm955 = vcmask 523264
  %v957 = vsel %vm955, %v929, 0
  %v960 = vsel %vm955, %v930, 0
  %962 = vmatprep.subr.bf16.mxu0 0
  %963 = vmatpush1.bf16.msra.mxu0 %v947
  %964 = vmatprep.subr.bf16.mxu0 0
  %965 = vmatpush1.bf16.msra.mxu0 %v948
  %966 = vmatprep.subr.bf16.mxu0 0
  %967 = vmatpush1.bf16.msra.mxu0 %v949
  %968 = vmatprep.subr.bf16.mxu0 0
  %969 = vmatpush1.bf16.msra.mxu0 %v950
  %970 = vmatprep.subr.bf16.mxu0 0
  %971 = vmatpush1.bf16.msra.mxu0 0
  %972 = vmatprep.subr.bf16.mxu0 0
  %973 = vmatpush1.bf16.msra.mxu0 0
  %974 = vmatprep.subr.bf16.mxu0 0
  %975 = vmatpush1.bf16.msra.mxu0 0
  %976 = vmatprep.subr.bf16.mxu0 0
  %977 = vmatpush1.bf16.msra.mxu0 0
  %978 = vmatprep.subr.bf16.mxu0 0
  %979 = vmatpush1.bf16.msra.mxu0 0
  %980 = vmatprep.subr.bf16.mxu0 0
  %981 = vmatpush1.bf16.msra.mxu0 0
  %982 = vmatprep.subr.bf16.mxu0 0
  %983 = vmatpush1.bf16.msra.mxu0 0
  %984 = vmatprep.subr.bf16.mxu0 0
  %985 = vmatpush1.bf16.msra.mxu0 0
  %986 = vmatprep.subr.bf16.mxu0 0
  %987 = vmatpush1.bf16.msra.mxu0 0
  %988 = vmatprep.subr.bf16.mxu0 0
  %989 = vmatpush1.bf16.msra.mxu0 0
  %990 = vmatprep.subr.bf16.mxu0 0
  %991 = vmatpush1.bf16.msra.mxu0 0
  %992 = vmatprep.subr.bf16.mxu0 0
  %993 = vmatpush1.bf16.msra.mxu0 0
  %994 = vmatprep.mubr.bf16.mxu0 0
  %995 = vmatmul.mubr.bf16.gmra.mrb[0].mxu0 %v957
  %v996 = vpop.f32.mrb[0].mxu0
  %v997 = vadd.f32 0.0, %v996
  %v998 = vpop.f32.mrb[0].mxu0
  %v999 = vpop.f32.mrb[0].mxu0
  %v1000 = vadd.f32 0.0, %v999
  %v1001 = vpop.f32.mrb[0].mxu0
  %1002 = vmatprep.mubr.bf16.mxu0 0
  %1003 = vmatmul.mubr.bf16.gmra.mrb[0].mxu0 %v960
  %v1004 = vpop.f32.mrb[0].mxu0
  %v1005 = vadd.f32 0.0, %v1004
  %v1006 = vpop.f32.mrb[0].mxu0
  %v1007 = vpop.f32.mrb[0].mxu0
  %v1008 = vadd.f32 0.0, %v1007
  %v1009 = vpop.f32.mrb[0].mxu0
  %1010 = vdwg.mxu0
  %v1011 = vld [vmem:[%s9] sm:$0x1]
  %v1012 = vld [vmem:[%s10] sm:$0x1]
  %v1013 = vadd.f32 %v997, %v1000
  %v1014 = vadd.f32 %v1013, %v1005
  %v1015 = vadd.f32 %v1014, %v1008
  %v1016 = vrot.slane %v1015, 4
  %v1017 = vadd.f32 %v1015, %v1016
  %v1018 = vrot.slane %v1017, 2
  %v1019 = vadd.f32 %v1017, %v1018
  %v1020 = vrot.slane %v1019, 1
  %v1021 = vadd.f32 %v1019, %v1020
  %v1022 = vmul.f32 %v997, %v997
  %v1023 = vmul.f32 %v1000, %v1000
  %v1024 = vmul.f32 %v1005, %v1005
  %v1025 = vmul.f32 %v1008, %v1008
  %v1026 = vadd.f32 %v1022, %v1023
  %v1027 = vadd.f32 %v1026, %v1024
  %v1028 = vadd.f32 %v1027, %v1025
  %v1029 = vrot.slane %v1028, 4
  %v1030 = vadd.f32 %v1028, %v1029
  %v1031 = vrot.slane %v1030, 2
  %v1032 = vadd.f32 %v1030, %v1031
  %v1033 = vrot.slane %v1032, 1
  %v1034 = vadd.f32 %v1032, %v1033
  %v1035 = vsel %vm278, %v1021, %v1034
  %1036 = vmatprep.subr.mxu0 0.0
  %1037 = vmatpush1.msra.mxu0 %v48
  %1038 = vmatprep.subr.mxu0 0.0
  %1039 = vmatpush1.msra.mxu0 %v49
  %1040 = vmatprep.subr.mxu0 0.0
  %1041 = vmatpush1.msra.mxu0 %v50
  %1042 = vmatprep.subr.mxu0 0.0
  %1043 = vmatpush1.msra.mxu0 %v51
  %1044 = vmatprep.subr.mxu0 0.0
  %1045 = vmatpush1.msra.mxu0 %v52
  %1046 = vmatprep.subr.mxu0 0.0
  %1047 = vmatpush1.msra.mxu0 %v53
  %1048 = vmatprep.subr.mxu0 0.0
  %1049 = vmatpush1.msra.mxu0 %v54
  %1050 = vmatprep.subr.mxu0 0.0
  %1051 = vmatpush1.msra.mxu0 %v55
  %1052 = vmatprep.subr.mxu0 0.0
  %1053 = vmatpush1.msra.mxu0 %v56
  %1054 = vmatprep.subr.mxu0 0.0
  %1055 = vmatpush1.msra.mxu0 %v57
  %1056 = vmatprep.subr.mxu0 0.0
  %1057 = vmatpush1.msra.mxu0 %v58
  %1058 = vmatprep.subr.mxu0 0.0
  %1059 = vmatpush1.msra.mxu0 %v59
  %1060 = vmatprep.subr.mxu0 0.0
  %1061 = vmatpush1.msra.mxu0 %v60
  %1062 = vmatprep.subr.mxu0 0.0
  %1063 = vmatpush1.msra.mxu0 %v61
  %1064 = vmatprep.subr.mxu0 0.0
  %1065 = vmatpush1.msra.mxu0 %v62
  %1066 = vmatprep.subr.mxu0 0.0
  %1067 = vmatpush1.msra.mxu0 %v63
  %1068 = vmatprep.subr.mxu0 0.0
  %1069 = vmatpush1.msra.mxu0 0.0
  %1070 = vmatprep.subr.mxu0 0.0
  %1071 = vmatpush1.msra.mxu0 0.0
  %1072 = vmatprep.subr.mxu0 0.0
  %1073 = vmatpush1.msra.mxu0 0.0
  %1074 = vmatprep.subr.mxu0 0.0
  %1075 = vmatpush1.msra.mxu0 0.0
  %1076 = vmatprep.subr.mxu0 0.0
  %1077 = vmatpush1.msra.mxu0 0.0
  %1078 = vmatprep.subr.mxu0 0.0
  %1079 = vmatpush1.msra.mxu0 0.0
  %1080 = vmatprep.subr.mxu0 0.0
  %1081 = vmatpush1.msra.mxu0 0.0
  %1082 = vmatprep.subr.mxu0 0.0
  %1083 = vmatpush1.msra.mxu0 0.0
  %1084 = vmatprep.subr.mxu0 0.0
  %1085 = vmatpush1.msra.mxu0 0.0
  %1086 = vmatprep.subr.mxu0 0.0
  %1087 = vmatpush1.msra.mxu0 0.0
  %1088 = vmatprep.subr.mxu0 0.0
  %1089 = vmatpush1.msra.mxu0 0.0
  %1090 = vmatprep.subr.mxu0 0.0
  %1091 = vmatpush1.msra.mxu0 0.0
  %1092 = vmatprep.subr.mxu0 0.0
  %1093 = vmatpush1.msra.mxu0 0.0
  %1094 = vmatprep.subr.mxu0 0.0
  %1095 = vmatpush1.msra.mxu0 0.0
  %1096 = vmatprep.subr.mxu0 0.0
  %1097 = vmatpush1.msra.mxu0 0.0
  %1098 = vmatprep.subr.mxu0 0.0
  %1099 = vmatpush1.msra.mxu0 0.0
  %1100 = vmatprep.mubr.f32.mxu0 0.0
  %1101 = vmatmul.mubr.f32.gmra.mrb[0].mxu0 %v1035
  %v1102 = vpop.f32.mrb[0].mxu0
  %v1103 = vadd.f32 0.0, %v1102
  %v1104 = vpop.f32.mrb[0].mxu0
  %1105 = vdwg.mxu0
  %v1106 = vmul.f32 %v1103, 0.001953125
  %v1107 = vmul.f32 %v1106, %v1106
  %v1109 = vrot.slane %v1107, 7
  %v1111 = vsub.f32 %v1106, %v1109
  %v1112 = vlaneseq
  %v1113 = vshrl.u32 %v1112, 7
  %v1114 = vsub.s32 0, %v1113
  %v1115 = vrot.slane %v1106, %v1114
  %v1116 = vsub.f32 %v997, %v1115
  %v1117 = vsub.f32 %v1000, %v1115
  %v1118 = vsub.f32 %v1005, %v1115
  %v1119 = vsub.f32 %v1008, %v1115
  %v1120 = vadd.f32 %v1111, 1e-05
  %v1121 = vrsqrt.pop %v1120
  %v1122 = vlaneseq
  %v1123 = vshrl.u32 %v1122, 7
  %v1124 = vsub.s32 1, %v1123
  %v1125 = vrot.slane %v1121, %v1124
  %v1126 = vmul.f32 %v1116, %v1125
  %v1127 = vmul.f32 %v1117, %v1125
  %v1128 = vmul.f32 %v1118, %v1125
  %v1129 = vmul.f32 %v1119, %v1125
  %v1131 = vlaneseq
  %v1132 = vshrl.u32 %v1131, 7
  %v1133 = vsub.s32 0, %v1132
  %v1134 = vrot.slane %v1011, %v1133
  %v1136 = vmul.f32 %v1126, %v1134
  %v1137 = vmul.f32 %v1127, %v1134
  %v1138 = vmul.f32 %v1128, %v1134
  %v1139 = vmul.f32 %v1129, %v1134
  %v1141 = vlaneseq
  %v1142 = vshrl.u32 %v1141, 7
  %v1143 = vsub.s32 0, %v1142
  %v1144 = vrot.slane %v1012, %v1143
  %v1146 = vadd.f32 %v1136, %v1144
  %v1147 = vadd.f32 %v1137, %v1144
  %v1148 = vadd.f32 %v1138, %v1144
  %v1149 = vadd.f32 %v1139, %v1144
  %v1150 = vadd.f32 %v905, %v1146
  %v1151 = vadd.f32 %v906, %v1147
  %v1152 = vadd.f32 %v907, %v1148
  %v1153 = vadd.f32 %v908, %v1149
  %v1154 = vmax.f32 %v1150, 0.0
  %v1155 = vmax.f32 %v1151, 0.0
  %v1156 = vmax.f32 %v1152, 0.0
  %v1157 = vmax.f32 %v1153, 0.0
  %1158 = vst [vmem:[%s14] sm:$0xff] %v1154
  %1159 = vst [vmem:[%s14 + $0x8] sm:$0xff] %v1155
  %1160 = vst [vmem:[%s14 + $0x10] sm:$0xff] %v1156
  %1161 = vst [vmem:[%s14 + $0x18] sm:$0xff] %v1157
  // Predicated region
  $region58: #{forward.1} parent=0 // pred_check
    _
  $region59: #{forward.1} parent=0 // pred_check_branch
    %1163 = sbr.rel (0) target = $region61
  $region60: #{forward.1} parent=0 // pred_region
    _
  $region61: #{forward.1} parent=0 // pred_fallthru
    _
  // Predicated region
  $region62: #{forward.1} parent=0 // pred_check
    _
  $region63: #{forward.1} parent=0 // pred_check_branch
    %1165 = sbr.rel (0) target = $region65
  $region64: #{forward.1} parent=0 // pred_region
    _
  $region65: #{forward.1} parent=0 // pred_fallthru
    _

</llo_original>
